<compile_context>
chip_gen: v6e
topology: v6e:2x2x1
jax: 0.10.0
libtpu: 0.0.40
codegen_flags: <defaults>
</compile_context>

<pallas_src>
import jax
import jax.numpy as jnp
from jax import lax
from jax.experimental import pallas as pl
from jax.experimental.pallas import tpu as pltpu


def _round_up(a, m):
    return ((a + m - 1) // m) * m


def router_kernel(x_ref, m_ref, o_ref):
    # x_ref: (TB, CHW) batch tile of the flattened NCHW input (lane-dense last dim)
    # m_ref: (CHW, O)  conv weight tiled over all patch positions (resident block)
    # o_ref: (TB, O)   un-biased routed logits for this batch tile
    o_ref[...] = jnp.dot(
        x_ref[...], m_ref[...], preferred_element_type=jnp.float32
    ).astype(o_ref.dtype)


def router_forward(x_nchw, weight, bias, patch_size=4, stride=4):
    """x_nchw: (B, C, H, W); weight: (O, C, p, p); bias: (O,). Returns (B, O) f32."""
    assert patch_size == stride, "kernel assumes non-overlapping patches"
    B, C, H, W = x_nchw.shape
    O, Cw, kh, kw = weight.shape
    assert Cw == C and kh == patch_size and kw == patch_size
    assert H % patch_size == 0 and W % patch_size == 0, (
        "H and W must be divisible by patch_size (conv would silently drop the "
        "remainder; the fused collapse would not)")

    p = patch_size
    Ph, Pw = H // p, W // p
    P = Ph * Pw
    CHW = C * H * W

    # --- flatten x: free reshape, NCHW is contiguous -> (B, C*H*W) ---
    x_flat = x_nchw.reshape(B, CHW)

    # --- expanded weight: M[c*H*W + h*W + w, o] = weight[o, c, h%p, w%p] ---
    # (tiny: CHW x O floats; built once)
    w_t = jnp.transpose(weight, (1, 2, 3, 0)).astype(jnp.float32)      # (C, p, p, O)
    m = jnp.tile(w_t.reshape(C, 1, p, 1, p, O), (1, Ph, 1, Pw, 1, 1))   # (C,Ph,p,Pw,p,O)
    m = m.reshape(CHW, O).astype(x_flat.dtype)                          # match x dtype

    # --- batch tiling ---
    # One input block capped at ~8 MiB so double-buffering stays ~16 MiB; for
    # large B, cap the tile at ceil(B/2) so the "parallel" grid has >= 2 steps
    # (lets v7x shard batch tiles across its 2 TensorCores).
    itemsize = jnp.dtype(x_flat.dtype).itemsize
    row_bytes = CHW * itemsize
    vmem_rows = max(8, (((8 * 1024 * 1024) // row_bytes) // 8) * 8)
    if B <= min(1024, vmem_rows):
        TB = B                                           # single full block
    else:
        TB = min(vmem_rows, 8192, _round_up(-(-B // 2), 8))
        TB = max(8, (TB // 8) * 8)
    num_steps = pl.cdiv(B, TB)
    # Non-divisible grids are fine: out-of-bounds rows of the last block are
    # never stored (masked), and each output row depends only on its own
    # in-bounds input row.

    out = pl.pallas_call(
        router_kernel,
        out_shape=jax.ShapeDtypeStruct((B, O), jnp.float32),
        grid_spec=pltpu.PrefetchScalarGridSpec(
            num_scalar_prefetch=0,
            grid=(num_steps,),
            in_specs=[
                pl.BlockSpec((TB, CHW), lambda i: (i, 0)),   # lane-dense x tile
                pl.BlockSpec((CHW, O), lambda i: (0, 0)),    # resident weight
            ],
            out_specs=pl.BlockSpec((TB, O), lambda i: (i, 0)),
        ),
        compiler_params=pltpu.CompilerParams(
            dimension_semantics=("parallel",),
            vmem_limit_bytes=32 * 1024 * 1024,   # v5e scoped default is only 16 MiB
        ),
    )(x_flat, m)

    # Bias added once on the tiny (B, O) result (pre-scaled by the patch count).
    pbias = (bias.astype(jnp.float32) * jnp.float32(P)).reshape(1, O)
    return out + pbias


def router_reference(x_nchw, weight, bias, patch_size=4, stride=4):
    """Pure-JAX reference mirroring the PyTorch forward (eval mode)."""
    y = lax.conv_general_dilated(
        x_nchw, weight,
        window_strides=(stride, stride),
        padding="VALID",
        dimension_numbers=("NCHW", "OIHW", "NCHW"),
    ) + bias.reshape(1, -1, 1, 1)
    y = jnp.sum(y, axis=2)
    y = jnp.sum(y, axis=2)
    return y


if __name__ == "__main__":
    B, C, H, W = 2, 3, 16, 16       # Conv2d(3, out_dim, ...) fixes C=3
    out_dim = 8
    patch_size = 4
    stride = 4

    key = jax.random.PRNGKey(0)
    kx, kw, kb = jax.random.split(key, 3)

    x = jax.random.normal(kx, (B, C, H, W), dtype=jnp.float32)
    # Module's reset_parameters() sets these to zero; we use deterministic
    # nonzero values so the kernel path is non-trivial.
    weight = 0.1 * jax.random.normal(
        kw, (out_dim, C, patch_size, patch_size), dtype=jnp.float32)
    bias = 0.1 * jax.random.normal(kb, (out_dim,), dtype=jnp.float32)

    out = router_forward(x, weight, bias, patch_size, stride)
    out = jax.block_until_ready(out)

    ref = router_reference(x, weight, bias, patch_size, stride)
    assert out.shape == (B, out_dim)
    assert jnp.allclose(out, ref, atol=1e-4, rtol=1e-4), (out, ref)

    print("KERNEL_OK")
</pallas_src>

<mosaic_0001>
module attributes {stable_mosaic.version = 11 : i64} {
  func.func @router_kernel(%arg0: i32, %arg1: memref<2x768xf32, #tpu.memory_space<vmem>>, %arg2: memref<768x8xf32, #tpu.memory_space<vmem>>, %arg3: memref<2x8xf32, #tpu.memory_space<vmem>>) attributes {dimension_semantics = [#tpu.dimension_semantics<parallel>], iteration_bounds = array<i64: 1>, scalar_prefetch = 0 : i64, scratch_operands = 0 : i64, tpu.core_type = #tpu.core_type<tc>, window_params = [{transform_indices = @transform_0, window_bounds = array<i64: 2, 768>}, {pipeline_mode = #tpu.pipeline_mode<synchronous>, transform_indices = @transform_1, window_bounds = array<i64: 768, 8>}, {transform_indices = @transform_2, window_bounds = array<i64: 2, 8>}]} {
    %c0 = arith.constant 0 : index
    %c0_0 = arith.constant 0 : index
    %0 = vector.load %arg1[%c0, %c0_0] : memref<2x768xf32, #tpu.memory_space<vmem>>, vector<2x768xf32>
    %c0_1 = arith.constant 0 : index
    %c0_2 = arith.constant 0 : index
    %1 = vector.load %arg2[%c0_1, %c0_2] : memref<768x8xf32, #tpu.memory_space<vmem>>, vector<768x8xf32>
    %cst = arith.constant dense<0.000000e+00> : vector<2x8xf32>
    %2 = tpu.matmul %0, %1, %cst {dimension_numbers = #tpu.dot_dimension_numbers<[1], [0], [0], [1], [0, 0, 1, 1], [], []>} : vector<2x768xf32>, vector<768x8xf32>, vector<2x8xf32> -> vector<2x8xf32>
    %c0_3 = arith.constant 0 : index
    %c0_4 = arith.constant 0 : index
    %3 = vector.load %arg3[%c0_3, %c0_4] : memref<2x8xf32, #tpu.memory_space<vmem>>, vector<2x8xf32>
    tpu.vector_store %arg3[%c0_3, %c0_4], %2 {strides = array<i32>} : memref<2x8xf32, #tpu.memory_space<vmem>>, vector<2x8xf32>,
    return
  }
  func.func @transform_0(%arg0: i32) -> (i32, i32) {
    %c0_i32 = arith.constant 0 : i32
    %c0_i32_0 = arith.constant 0 : i32
    return %arg0, %c0_i32 : i32, i32
  }
  func.func @transform_1(%arg0: i32) -> (i32, i32) {
    %c0_i32 = arith.constant 0 : i32
    %c0_i32_0 = arith.constant 0 : i32
    %c0_i32_1 = arith.constant 0 : i32
    return %c0_i32, %c0_i32_0 : i32, i32
  }
  func.func @transform_2(%arg0: i32) -> (i32, i32) {
    %c0_i32 = arith.constant 0 : i32
    %c0_i32_0 = arith.constant 0 : i32
    return %arg0, %c0_i32 : i32, i32
  }
}

</mosaic_0001>

<llo_original>
// kernel: tpu_custom_call.1
$region0: #{tpu_custom_call.1}
  #allocation0 [shape = 'u32[]', space=smem, size = 0x4, offset = 0x4, fixed_abs, tag = 'smem constant byte address 0x4 - core index']
  #allocation1 [shape = 'u32[144,128]{1,0:T(1,128)}', space=vmem, size = 0x12000, scoped, tag = 'internal scratch']
  %s0 = inlined_call_operand.vmem [shape: f32[2,768], index: 0, kind: input, shape index: {}]
  %s1 = inlined_call_operand.vmem [shape: f32[768,8], index: 1, kind: input, shape index: {}]
  %s2 = inlined_call_operand.hbm [shape: f32[2,8], index: 2, kind: output, shape index: {}]
  %s3 = sld [smem:[#allocation0]]
  $region18: #{tpu_custom_call.1} parent=0
    _
  %s5 = ssub.s32 1, %s3
  %s6 = scalar_select 0, %s5, %s3
  $region1: #{tpu_custom_call.1} parent=0
    #allocation2 [shape = 'u8[1024]{0}', space=vmem, size = 0x400, scoped, tag = 'output window, operand 0, single buffered']
    #allocation3 [shape = 's32[1]{0}', space=sflag, size = 0x4, scoped, tag = 'scoped memory for tpu_custom_call.1']
    %7 = vsyncpa [#allocation3], 0
    // Predicated region
    $region2: #{tpu_custom_call.1} parent=1 // pred_check
      _
    $region3: #{tpu_custom_call.1} parent=1 // pred_check_branch
      %9 = sbr.rel (0) target = $region5
    $region4: #{tpu_custom_call.1} parent=1 // pred_region
      _
    $region5: #{tpu_custom_call.1} parent=1 // pred_fallthru
      _
    // Predicated region
    $region6: #{tpu_custom_call.1} parent=1 // pred_check
      _
    $region7: #{tpu_custom_call.1} parent=1 // pred_check_branch
      %11 = sbr.rel (0) target = $region9
    $region8: #{tpu_custom_call.1} parent=1 // pred_region
      _
    $region9: #{tpu_custom_call.1} parent=1 // pred_fallthru
      _
    %v12 = vld [vmem:[%s0] sm:$0xff]
    %v13 = vld [vmem:[%s0 + $0x8] sm:$0xf]
    %v14 = vld [vmem:[%s1] sm:$0xff]
    %v15 = vld [vmem:[%s1 + $0x8] sm:$0xff]
    %v16 = vld [vmem:[%s1 + $0x10] sm:$0xff]
    %v17 = vld [vmem:[%s1 + $0x18] sm:$0xff]
    %v18 = vld [vmem:[%s1 + $0x20] sm:$0xff]
    %v19 = vld [vmem:[%s1 + $0x28] sm:$0xff]
    %v20 = vld [vmem:[%s1 + $0x30] sm:$0xff]
    %v21 = vld [vmem:[%s1 + $0x38] sm:$0xff]
    %v22 = vld [vmem:[%s1 + $0x40] sm:$0xff]
    %v23 = vld [vmem:[%s1 + $0x48] sm:$0xff]
    %v24 = vld [vmem:[%s1 + $0x50] sm:$0xff]
    %v25 = vld [vmem:[%s1 + $0x58] sm:$0xff]
    %v26 = vld [vmem:[%s1 + $0x60] sm:$0xff]
    %v27 = vld [vmem:[%s1 + $0x68] sm:$0xff]
    %v28 = vld [vmem:[%s1 + $0x70] sm:$0xff]
    %v29 = vld [vmem:[%s1 + $0x78] sm:$0xff]
    %v30 = vld [vmem:[%s1 + $0x80] sm:$0xff]
    %v31 = vld [vmem:[%s1 + $0x88] sm:$0xff]
    %v32 = vld [vmem:[%s1 + $0x90] sm:$0xff]
    %v33 = vld [vmem:[%s1 + $0x98] sm:$0xff]
    %v34 = vld [vmem:[%s1 + $0xa0] sm:$0xff]
    %v35 = vld [vmem:[%s1 + $0xa8] sm:$0xff]
    %v36 = vld [vmem:[%s1 + $0xb0] sm:$0xff]
    %v37 = vld [vmem:[%s1 + $0xb8] sm:$0xff]
    %v38 = vld [vmem:[%s1 + $0xc0] sm:$0xff]
    %v39 = vld [vmem:[%s1 + $0xc8] sm:$0xff]
    %v40 = vld [vmem:[%s1 + $0xd0] sm:$0xff]
    %v41 = vld [vmem:[%s1 + $0xd8] sm:$0xff]
    %v42 = vld [vmem:[%s1 + $0xe0] sm:$0xff]
    %v43 = vld [vmem:[%s1 + $0xe8] sm:$0xff]
    %v44 = vld [vmem:[%s1 + $0xf0] sm:$0xff]
    %v45 = vld [vmem:[%s1 + $0xf8] sm:$0xff]
    %v46 = vld [vmem:[%s1 + $0x100] sm:$0xff]
    %v47 = vld [vmem:[%s1 + $0x108] sm:$0xff]
    %v48 = vld [vmem:[%s1 + $0x110] sm:$0xff]
    %v49 = vld [vmem:[%s1 + $0x118] sm:$0xff]
    %v50 = vld [vmem:[%s1 + $0x120] sm:$0xff]
    %v51 = vld [vmem:[%s1 + $0x128] sm:$0xff]
    %v52 = vld [vmem:[%s1 + $0x130] sm:$0xff]
    %v53 = vld [vmem:[%s1 + $0x138] sm:$0xff]
    %v54 = vld [vmem:[%s1 + $0x140] sm:$0xff]
    %v55 = vld [vmem:[%s1 + $0x148] sm:$0xff]
    %v56 = vld [vmem:[%s1 + $0x150] sm:$0xff]
    %v57 = vld [vmem:[%s1 + $0x158] sm:$0xff]
    %v58 = vld [vmem:[%s1 + $0x160] sm:$0xff]
    %v59 = vld [vmem:[%s1 + $0x168] sm:$0xff]
    %v60 = vld [vmem:[%s1 + $0x170] sm:$0xff]
    %v61 = vld [vmem:[%s1 + $0x178] sm:$0xff]
    %v62 = vld [vmem:[%s1 + $0x180] sm:$0xff]
    %v63 = vld [vmem:[%s1 + $0x188] sm:$0xff]
    %v64 = vld [vmem:[%s1 + $0x190] sm:$0xff]
    %v65 = vld [vmem:[%s1 + $0x198] sm:$0xff]
    %v66 = vld [vmem:[%s1 + $0x1a0] sm:$0xff]
    %v67 = vld [vmem:[%s1 + $0x1a8] sm:$0xff]
    %v68 = vld [vmem:[%s1 + $0x1b0] sm:$0xff]
    %v69 = vld [vmem:[%s1 + $0x1b8] sm:$0xff]
    %v70 = vld [vmem:[%s1 + $0x1c0] sm:$0xff]
    %v71 = vld [vmem:[%s1 + $0x1c8] sm:$0xff]
    %v72 = vld [vmem:[%s1 + $0x1d0] sm:$0xff]
    %v73 = vld [vmem:[%s1 + $0x1d8] sm:$0xff]
    %v74 = vld [vmem:[%s1 + $0x1e0] sm:$0xff]
    %v75 = vld [vmem:[%s1 + $0x1e8] sm:$0xff]
    %v76 = vld [vmem:[%s1 + $0x1f0] sm:$0xff]
    %v77 = vld [vmem:[%s1 + $0x1f8] sm:$0xff]
    %v78 = vld [vmem:[%s1 + $0x200] sm:$0xff]
    %v79 = vld [vmem:[%s1 + $0x208] sm:$0xff]
    %v80 = vld [vmem:[%s1 + $0x210] sm:$0xff]
    %v81 = vld [vmem:[%s1 + $0x218] sm:$0xff]
    %v82 = vld [vmem:[%s1 + $0x220] sm:$0xff]
    %v83 = vld [vmem:[%s1 + $0x228] sm:$0xff]
    %v84 = vld [vmem:[%s1 + $0x230] sm:$0xff]
    %v85 = vld [vmem:[%s1 + $0x238] sm:$0xff]
    %v86 = vld [vmem:[%s1 + $0x240] sm:$0xff]
    %v87 = vld [vmem:[%s1 + $0x248] sm:$0xff]
    %v88 = vld [vmem:[%s1 + $0x250] sm:$0xff]
    %v89 = vld [vmem:[%s1 + $0x258] sm:$0xff]
    %v90 = vld [vmem:[%s1 + $0x260] sm:$0xff]
    %v91 = vld [vmem:[%s1 + $0x268] sm:$0xff]
    %v92 = vld [vmem:[%s1 + $0x270] sm:$0xff]
    %v93 = vld [vmem:[%s1 + $0x278] sm:$0xff]
    %v94 = vld [vmem:[%s1 + $0x280] sm:$0xff]
    %v95 = vld [vmem:[%s1 + $0x288] sm:$0xff]
    %v96 = vld [vmem:[%s1 + $0x290] sm:$0xff]
    %v97 = vld [vmem:[%s1 + $0x298] sm:$0xff]
    %v98 = vld [vmem:[%s1 + $0x2a0] sm:$0xff]
    %v99 = vld [vmem:[%s1 + $0x2a8] sm:$0xff]
    %v100 = vld [vmem:[%s1 + $0x2b0] sm:$0xff]
    %v101 = vld [vmem:[%s1 + $0x2b8] sm:$0xff]
    %v102 = vld [vmem:[%s1 + $0x2c0] sm:$0xff]
    %v103 = vld [vmem:[%s1 + $0x2c8] sm:$0xff]
    %v104 = vld [vmem:[%s1 + $0x2d0] sm:$0xff]
    %v105 = vld [vmem:[%s1 + $0x2d8] sm:$0xff]
    %v106 = vld [vmem:[%s1 + $0x2e0] sm:$0xff]
    %v107 = vld [vmem:[%s1 + $0x2e8] sm:$0xff]
    %v108 = vld [vmem:[%s1 + $0x2f0] sm:$0xff]
    %v109 = vld [vmem:[%s1 + $0x2f8] sm:$0xff]
    %v112 = vcombine.high %v12, %v12
    %v114 = vunpack.c.l.s4 1983009808
    %v115 = vunpack.c.0.s8 %v114
    %v116 = vlaneseq
    %v117 = vshrl.u32 %v116, 7
    %v118 = vsub.s32 %v115, %v117
    %v119 = vrot.slane %v12, %v118
    %v121 = vunpack.c.l.s4 1983009808
    %v122 = vunpack.c.0.s8 %v121
    %v123 = vlaneseq
    %v124 = vshrl.u32 %v123, 7
    %v125 = vsub.s32 %v122, %v124
    %v126 = vrot.slane %v112, %v125
    %v127 = vcombine.high %v119, %v119
    %v128 = vcombine.high %v126, %v126
    %v130 = vunpack.c.l.s4 1983009808
    %v131 = vunpack.c.0.s8 %v130
    %v132 = vlaneseq
    %v133 = vshrl.u32 %v132, 7
    %v134 = vsub.s32 %v131, %v133
    %v135 = vrot.slane %v13, %v134
    %v136 = vcombine.high %v135, %v135
    %143 = vmatprep.subr.mxu0 0.0
    %144 = vmatpush1.msra.mxu0 %v29
    %145 = vmatprep.subr.mxu0 0.0
    %146 = vmatpush1.msra.mxu0 %v28
    %147 = vmatprep.subr.mxu0 0.0
    %148 = vmatpush1.msra.mxu0 %v27
    %149 = vmatprep.subr.mxu0 0.0
    %150 = vmatpush1.msra.mxu0 %v26
    %151 = vmatprep.subr.mxu0 0.0
    %152 = vmatpush1.msra.mxu0 %v25
    %153 = vmatprep.subr.mxu0 0.0
    %154 = vmatpush1.msra.mxu0 %v24
    %155 = vmatprep.subr.mxu0 0.0
    %156 = vmatpush1.msra.mxu0 %v23
    %157 = vmatprep.subr.mxu0 0.0
    %158 = vmatpush1.msra.mxu0 %v22
    %159 = vmatprep.subr.mxu0 0.0
    %160 = vmatpush1.msra.mxu0 %v21
    %161 = vmatprep.subr.mxu0 0.0
    %162 = vmatpush1.msra.mxu0 %v20
    %163 = vmatprep.subr.mxu0 0.0
    %164 = vmatpush1.msra.mxu0 %v19
    %165 = vmatprep.subr.mxu0 0.0
    %166 = vmatpush1.msra.mxu0 %v18
    %167 = vmatprep.subr.mxu0 0.0
    %168 = vmatpush1.msra.mxu0 %v17
    %169 = vmatprep.subr.mxu0 0.0
    %170 = vmatpush1.msra.mxu0 %v16
    %171 = vmatprep.subr.mxu0 0.0
    %172 = vmatpush1.msra.mxu0 %v15
    %173 = vmatprep.subr.mxu0 0.0
    %174 = vmatpush1.msra.mxu0 %v14
    %175 = vmatprep.subr.mxu0 0.0
    %176 = vmatpush2.msra.mxu0 %v45
    %177 = vmatprep.subr.mxu0 0.0
    %178 = vmatpush2.msra.mxu0 %v44
    %179 = vmatprep.subr.mxu0 0.0
    %180 = vmatpush2.msra.mxu0 %v43
    %181 = vmatprep.subr.mxu0 0.0
    %182 = vmatpush2.msra.mxu0 %v42
    %183 = vmatprep.subr.mxu0 0.0
    %184 = vmatpush2.msra.mxu0 %v41
    %185 = vmatprep.subr.mxu0 0.0
    %186 = vmatpush2.msra.mxu0 %v40
    %187 = vmatprep.subr.mxu0 0.0
    %188 = vmatpush2.msra.mxu0 %v39
    %189 = vmatprep.subr.mxu0 0.0
    %190 = vmatpush2.msra.mxu0 %v38
    %191 = vmatprep.subr.mxu0 0.0
    %192 = vmatpush2.msra.mxu0 %v37
    %193 = vmatprep.subr.mxu0 0.0
    %194 = vmatpush2.msra.mxu0 %v36
    %195 = vmatprep.subr.mxu0 0.0
    %196 = vmatpush2.msra.mxu0 %v35
    %197 = vmatprep.subr.mxu0 0.0
    %198 = vmatpush2.msra.mxu0 %v34
    %199 = vmatprep.subr.mxu0 0.0
    %200 = vmatpush2.msra.mxu0 %v33
    %201 = vmatprep.subr.mxu0 0.0
    %202 = vmatpush2.msra.mxu0 %v32
    %203 = vmatprep.subr.mxu0 0.0
    %204 = vmatpush2.msra.mxu0 %v31
    %205 = vmatprep.subr.mxu0 0.0
    %206 = vmatpush2.msra.mxu0 %v30
    %207 = vmatprep.mubr.f32.mxu0 %v127
    %208 = vmatmul.mubr.f32.gmra.mxu0 %v119
    %v209 = vpop.f32.mrf.mxu0
    %v210 = vadd.f32 0.0, %v209
    %v211 = vpop.f32.mrf.mxu0
    %212 = vdwg.mxu0
    %213 = vmatprep.subr.mxu0 0.0
    %214 = vmatpush1.msra.mxu0 %v61
    %215 = vmatprep.subr.mxu0 0.0
    %216 = vmatpush1.msra.mxu0 %v60
    %217 = vmatprep.subr.mxu0 0.0
    %218 = vmatpush1.msra.mxu0 %v59
    %219 = vmatprep.subr.mxu0 0.0
    %220 = vmatpush1.msra.mxu0 %v58
    %221 = vmatprep.subr.mxu0 0.0
    %222 = vmatpush1.msra.mxu0 %v57
    %223 = vmatprep.subr.mxu0 0.0
    %224 = vmatpush1.msra.mxu0 %v56
    %225 = vmatprep.subr.mxu0 0.0
    %226 = vmatpush1.msra.mxu0 %v55
    %227 = vmatprep.subr.mxu0 0.0
    %228 = vmatpush1.msra.mxu0 %v54
    %229 = vmatprep.subr.mxu0 0.0
    %230 = vmatpush1.msra.mxu0 %v53
    %231 = vmatprep.subr.mxu0 0.0
    %232 = vmatpush1.msra.mxu0 %v52
    %233 = vmatprep.subr.mxu0 0.0
    %234 = vmatpush1.msra.mxu0 %v51
    %235 = vmatprep.subr.mxu0 0.0
    %236 = vmatpush1.msra.mxu0 %v50
    %237 = vmatprep.subr.mxu0 0.0
    %238 = vmatpush1.msra.mxu0 %v49
    %239 = vmatprep.subr.mxu0 0.0
    %240 = vmatpush1.msra.mxu0 %v48
    %241 = vmatprep.subr.mxu0 0.0
    %242 = vmatpush1.msra.mxu0 %v47
    %243 = vmatprep.subr.mxu0 0.0
    %244 = vmatpush1.msra.mxu0 %v46
    %245 = vmatprep.subr.mxu0 0.0
    %246 = vmatpush2.msra.mxu0 %v77
    %247 = vmatprep.subr.mxu0 0.0
    %248 = vmatpush2.msra.mxu0 %v76
    %249 = vmatprep.subr.mxu0 0.0
    %250 = vmatpush2.msra.mxu0 %v75
    %251 = vmatprep.subr.mxu0 0.0
    %252 = vmatpush2.msra.mxu0 %v74
    %253 = vmatprep.subr.mxu0 0.0
    %254 = vmatpush2.msra.mxu0 %v73
    %255 = vmatprep.subr.mxu0 0.0
    %256 = vmatpush2.msra.mxu0 %v72
    %257 = vmatprep.subr.mxu0 0.0
    %258 = vmatpush2.msra.mxu0 %v71
    %259 = vmatprep.subr.mxu0 0.0
    %260 = vmatpush2.msra.mxu0 %v70
    %261 = vmatprep.subr.mxu0 0.0
    %262 = vmatpush2.msra.mxu0 %v69
    %263 = vmatprep.subr.mxu0 0.0
    %264 = vmatpush2.msra.mxu0 %v68
    %265 = vmatprep.subr.mxu0 0.0
    %266 = vmatpush2.msra.mxu0 %v67
    %267 = vmatprep.subr.mxu0 0.0
    %268 = vmatpush2.msra.mxu0 %v66
    %269 = vmatprep.subr.mxu0 0.0
    %270 = vmatpush2.msra.mxu0 %v65
    %271 = vmatprep.subr.mxu0 0.0
    %272 = vmatpush2.msra.mxu0 %v64
    %273 = vmatprep.subr.mxu0 0.0
    %274 = vmatpush2.msra.mxu0 %v63
    %275 = vmatprep.subr.mxu0 0.0
    %276 = vmatpush2.msra.mxu0 %v62
    %277 = vmatprep.mubr.f32.mxu0 %v128
    %278 = vmatmul.mubr.f32.gmra.mxu0 %v126
    %v279 = vpop.f32.mrf.mxu0
    %v280 = vadd.f32 %v210, %v279
    %v281 = vpop.f32.mrf.mxu0
    %282 = vdwg.mxu0
    %283 = vmatprep.subr.mxu0 0.0
    %284 = vmatpush1.msra.mxu0 %v93
    %285 = vmatprep.subr.mxu0 0.0
    %286 = vmatpush1.msra.mxu0 %v92
    %287 = vmatprep.subr.mxu0 0.0
    %288 = vmatpush1.msra.mxu0 %v91
    %289 = vmatprep.subr.mxu0 0.0
    %290 = vmatpush1.msra.mxu0 %v90
    %291 = vmatprep.subr.mxu0 0.0
    %292 = vmatpush1.msra.mxu0 %v89
    %293 = vmatprep.subr.mxu0 0.0
    %294 = vmatpush1.msra.mxu0 %v88
    %295 = vmatprep.subr.mxu0 0.0
    %296 = vmatpush1.msra.mxu0 %v87
    %297 = vmatprep.subr.mxu0 0.0
    %298 = vmatpush1.msra.mxu0 %v86
    %299 = vmatprep.subr.mxu0 0.0
    %300 = vmatpush1.msra.mxu0 %v85
    %301 = vmatprep.subr.mxu0 0.0
    %302 = vmatpush1.msra.mxu0 %v84
    %303 = vmatprep.subr.mxu0 0.0
    %304 = vmatpush1.msra.mxu0 %v83
    %305 = vmatprep.subr.mxu0 0.0
    %306 = vmatpush1.msra.mxu0 %v82
    %307 = vmatprep.subr.mxu0 0.0
    %308 = vmatpush1.msra.mxu0 %v81
    %309 = vmatprep.subr.mxu0 0.0
    %310 = vmatpush1.msra.mxu0 %v80
    %311 = vmatprep.subr.mxu0 0.0
    %312 = vmatpush1.msra.mxu0 %v79
    %313 = vmatprep.subr.mxu0 0.0
    %314 = vmatpush1.msra.mxu0 %v78
    %315 = vmatprep.subr.mxu0 0.0
    %316 = vmatpush2.msra.mxu0 %v109
    %317 = vmatprep.subr.mxu0 0.0
    %318 = vmatpush2.msra.mxu0 %v108
    %319 = vmatprep.subr.mxu0 0.0
    %320 = vmatpush2.msra.mxu0 %v107
    %321 = vmatprep.subr.mxu0 0.0
    %322 = vmatpush2.msra.mxu0 %v106
    %323 = vmatprep.subr.mxu0 0.0
    %324 = vmatpush2.msra.mxu0 %v105
    %325 = vmatprep.subr.mxu0 0.0
    %326 = vmatpush2.msra.mxu0 %v104
    %327 = vmatprep.subr.mxu0 0.0
    %328 = vmatpush2.msra.mxu0 %v103
    %329 = vmatprep.subr.mxu0 0.0
    %330 = vmatpush2.msra.mxu0 %v102
    %331 = vmatprep.subr.mxu0 0.0
    %332 = vmatpush2.msra.mxu0 %v101
    %333 = vmatprep.subr.mxu0 0.0
    %334 = vmatpush2.msra.mxu0 %v100
    %335 = vmatprep.subr.mxu0 0.0
    %336 = vmatpush2.msra.mxu0 %v99
    %337 = vmatprep.subr.mxu0 0.0
    %338 = vmatpush2.msra.mxu0 %v98
    %339 = vmatprep.subr.mxu0 0.0
    %340 = vmatpush2.msra.mxu0 %v97
    %341 = vmatprep.subr.mxu0 0.0
    %342 = vmatpush2.msra.mxu0 %v96
    %343 = vmatprep.subr.mxu0 0.0
    %344 = vmatpush2.msra.mxu0 %v95
    %345 = vmatprep.subr.mxu0 0.0
    %346 = vmatpush2.msra.mxu0 %v94
    %347 = vmatprep.mubr.f32.mxu0 %v136
    %348 = vmatmul.mubr.f32.gmra.mxu0 %v135
    %v349 = vpop.f32.mrf.mxu0
    %v350 = vadd.f32 %v280, %v349
    %v351 = vpop.f32.mrf.mxu0
    %352 = vdwg.mxu0
    %vm353 = vcmask 58368
    %354 = vst.msk [vmem:[#allocation2] sm:$0x3] %vm353, %v350
    // Predicated region
    $region10: #{tpu_custom_call.1} parent=1 // pred_check
      _
    $region11: #{tpu_custom_call.1} parent=1 // pred_check_branch
      %356 = sbr.rel (0) target = $region13
    $region12: #{tpu_custom_call.1} parent=1 // pred_region
      %s358 = ssub.s32 32, 32
      %359 = vsyncadd [#allocation3], %s358
      %s361 = sshll.u32 [#allocation2], 4
      %s362 = int_to_ptr.vmem [resolvable:$true] %s361
      %364 = dma.vmem_to_hbm [thread:$0]  %s362, 32, %s2, [#allocation3]
    $region13: #{tpu_custom_call.1} parent=1 // pred_fallthru
      _
    // Predicated region
    $region14: #{tpu_custom_call.1} parent=1 // pred_check
      _
    $region15: #{tpu_custom_call.1} parent=1 // pred_check_branch
      %366 = sbr.rel (0) target = $region17
    $region16: #{tpu_custom_call.1} parent=1 // pred_region
      %367 = dma.done [#allocation3], 32
    $region17: #{tpu_custom_call.1} parent=1 // pred_fallthru
      _
    %368 = vsyncpa [#allocation3], 1

</llo_original>
